<compile_context>
chip_gen: v5e
topology: v5e:2x2
jax: 0.10.0
libtpu: 0.0.40
codegen_flags: <defaults>
</compile_context>

<pallas_src>
import jax
import jax.numpy as jnp
from jax import lax
from jax.experimental import pallas as pl
from jax.experimental.pallas import tpu as pltpu


# ----------------------------------------------------------------------------
# Kernels
# ----------------------------------------------------------------------------
def _linear_kernel(x_ref, w_ref, b_ref, xw_ref):
    """xw = x @ W^T + bias, computed exactly in f32 on the VPU.

    x_ref : (Bp, D1)   padded batch of summary vectors
    w_ref : (td2, D1)  tile of the torch-layout weight (out_features, in_features)
    b_ref : (1, td2)   tile of the bias
    xw_ref: (Bp, td2)  output tile
    """
    x = x_ref[...].astype(jnp.float32)                     # (Bp, D1)
    w = w_ref[...].astype(jnp.float32)                     # (td2, D1)
    # Broadcast-multiply + lane reduce: exact f32 (matches a HIGHEST-precision
    # reference); the MXU is not needed for this tiny (Bp x td2 x D1) product.
    # TODO(synk): for very large D1*D2 switch this to a K-tiled MXU matmul.
    xw = jnp.sum(x[:, None, :] * w[None, :, :], axis=-1)   # (Bp, td2)
    xw_ref[...] = (xw + b_ref[...].astype(jnp.float32)).astype(xw_ref.dtype)


def _score_kernel(xw_ref, y_ref, o_ref):
    """out[b, s] = sum_d y[b, s, d] * xw[b, d]   (memory-bound on y).

    xw_ref: (bb, D2)   precomputed linear output rows for this batch tile
    y_ref : (bb, ts, D2)
    o_ref : (bb, ts)
    """
    xw = xw_ref[...].astype(jnp.float32)                   # (bb, D2)
    y = y_ref[...].astype(jnp.float32)                     # (bb, ts, D2)
    # VPU multiply + lane reduce; an N=1 MXU matmul under-fills the MXU and
    # cannot speed up a kernel bound on the y HBM stream.  (On v5e, if the
    # bundle ever shows the XLU as the binding slot for large D2, switch this
    # to a batched dot_general instead.)
    o_ref[...] = jnp.sum(y * xw[:, None, :], axis=-1).astype(o_ref.dtype)


# ----------------------------------------------------------------------------
# Tile / VMEM budgeting
# ----------------------------------------------------------------------------
def _round_up(n, m):
    return ((n + m - 1) // m) * m


def _physical_vmem_bytes():
    try:
        info = pltpu.get_tpu_info()
        cap = getattr(info, "vmem_capacity_bytes", None)
        if cap:
            return int(cap)
    except Exception:
        pass
    return 64 << 20  # most conservative generation (v7x, per TensorCore)


def _aligned_divisors(n, unit, cap):
    """Multiples of `unit` that divide n, descending, capped at `cap`."""
    out = [m for m in range(unit, min(n, cap) + 1, unit) if n % m == 0]
    return sorted(out, reverse=True) or [n]


def _score_vmem_bytes(bb, ts, d2, itemsize=4):
    # Double-buffered y / out / xw blocks.
    return itemsize * 2 * (bb * ts * d2 + bb * ts + bb * d2)


def _pick_score_tiles(b_pad, s_pad, d2, phys_vmem):
    budget = int(0.45 * phys_vmem)
    bb_opts = _aligned_divisors(b_pad, 8, 128)
    ts_opts = _aligned_divisors(s_pad, 128, 4096)
    # Prefer the largest sequence tile (lane-dense stores, fewest grid steps,
    # keeps the y DMA stream saturated -- the main lever on v5e), then the
    # largest batch tile that still fits the per-generation VMEM budget.
    for ts in ts_opts:
        for bb in bb_opts:
            if _score_vmem_bytes(bb, ts, d2) <= budget:
                return bb, ts
    return bb_opts[-1], ts_opts[-1]  # smallest legal tiles


def _ensure_two_parallel_steps(bb, ts, b_pad, s_pad):
    # v7x has two TensorCores that only get work through parallel grid axes;
    # make sure there are >= 2 grid steps when the alignment rules allow it.
    if (b_pad // bb) * (s_pad // ts) >= 2:
        return bb, ts
    if ts >= 256 and (ts // 2) % 128 == 0 and s_pad % (ts // 2) == 0:
        return bb, ts // 2
    if bb >= 16 and (bb // 2) % 8 == 0 and b_pad % (bb // 2) == 0:
        return bb // 2, ts
    return bb, ts


# ----------------------------------------------------------------------------
# pallas_call wrappers
# ----------------------------------------------------------------------------
def _linear_xw(x_pad, w, b2):
    """(B_pad, D1) @ (D2, D1)^T + (1, D2) -> (B_pad, D2) via a tiny Pallas kernel."""
    b_pad, d1 = x_pad.shape
    d2 = w.shape[0]
    if d2 % 256 == 0:
        td2 = 256
    elif d2 % 128 == 0:
        td2 = 128
    else:
        td2 = d2
    grid = (d2 // td2,)
    return pl.pallas_call(
        _linear_kernel,
        out_shape=jax.ShapeDtypeStruct((b_pad, d2), jnp.float32),
        grid_spec=pltpu.PrefetchScalarGridSpec(
            num_scalar_prefetch=0,
            grid=grid,
            in_specs=[
                pl.BlockSpec((b_pad, d1), lambda j: (0, 0)),
                pl.BlockSpec((td2, d1), lambda j: (j, 0)),
                pl.BlockSpec((1, td2), lambda j: (0, j)),
            ],
            out_specs=pl.BlockSpec((b_pad, td2), lambda j: (0, j)),
        ),
        compiler_params=pltpu.CompilerParams(
            dimension_semantics=("parallel",),
        ),
    )(x_pad, w, b2)


def _score(xw, y_pad, out_dtype):
    b_pad, d2 = xw.shape
    _, s_pad, _ = y_pad.shape
    phys = _physical_vmem_bytes()
    bb, ts = _pick_score_tiles(b_pad, s_pad, d2, phys)
    bb, ts = _ensure_two_parallel_steps(bb, ts, b_pad, s_pad)
    grid = (b_pad // bb, s_pad // ts)

    est = _score_vmem_bytes(bb, ts, d2)
    vmem_limit = int(min(max(2 * est, 16 << 20), int(0.7 * phys)))

    return pl.pallas_call(
        _score_kernel,
        out_shape=jax.ShapeDtypeStruct((b_pad, s_pad), out_dtype),
        grid_spec=pltpu.PrefetchScalarGridSpec(
            num_scalar_prefetch=0,
            grid=grid,
            in_specs=[
                pl.BlockSpec((bb, d2), lambda i, j: (i, 0)),
                pl.BlockSpec((bb, ts, d2), lambda i, j: (i, j, 0)),
            ],
            out_specs=pl.BlockSpec((bb, ts), lambda i, j: (i, j)),
        ),
        compiler_params=pltpu.CompilerParams(
            dimension_semantics=("parallel", "parallel"),
            vmem_limit_bytes=vmem_limit,
        ),
    )(xw, y_pad)


def bilinear_seq_att(x, y, w, b):
    """x: (B, D1); y: (B, S, D2); w: (D2, D1) torch layout; b: (D2,).

    Returns (B, S) scores == bmm(y, (x @ w.T + b).unsqueeze(2)).squeeze(2).
    """
    B, D1 = x.shape
    By, S, D2 = y.shape
    assert By == B and w.shape == (D2, D1) and b.shape == (D2,)

    # Pad to (8, 128)-aligned shapes so every block is lane-dense; padded rows
    # of y are zeros, so their (discarded) scores are harmless.
    b_pad = _round_up(B, 8)
    s_pad = _round_up(S, 128)
    x_pad = jnp.pad(x, ((0, b_pad - B), (0, 0))) if b_pad != B else x
    if b_pad != B or s_pad != S:
        y_pad = jnp.pad(y, ((0, b_pad - B), (0, s_pad - S), (0, 0)))
    else:
        y_pad = y

    xw = _linear_xw(
        x_pad.astype(jnp.float32),
        w.astype(jnp.float32),
        b.reshape(1, D2).astype(jnp.float32),
    )
    out = _score(xw, y_pad, x.dtype)
    return out[:B, :S]


# ----------------------------------------------------------------------------
# Reference + self-test
# ----------------------------------------------------------------------------
def _reference(x, y, w, b):
    xw = jnp.dot(x, w.T, precision=lax.Precision.HIGHEST) + b          # (B, D2)
    return jnp.einsum("bsd,bd->bs", y, xw, precision=lax.Precision.HIGHEST)


if __name__ == "__main__":
    # batch=2, seq=8, input_dim1=32, input_dim2=32
    B, S, D1, D2 = 2, 8, 32, 32
    key = jax.random.PRNGKey(0)
    kx, ky, kw, kb = jax.random.split(key, 4)

    x = jax.random.normal(kx, (B, D1), dtype=jnp.float32)
    y = jax.random.normal(ky, (B, S, D2), dtype=jnp.float32)

    # nn.Linear(D1 -> D2): weight (D2, D1), bias (D2,), U(-1/sqrt(D1), 1/sqrt(D1))
    limit = 1.0 / (D1 ** 0.5)
    w = jax.random.uniform(kw, (D2, D1), jnp.float32, -limit, limit)
    b = jax.random.uniform(kb, (D2,), jnp.float32, -limit, limit)

    out = jax.block_until_ready(bilinear_seq_att(x, y, w, b))

    ref = _reference(x, y, w, b)
    assert out.shape == (B, S)
    assert jnp.allclose(out, ref, atol=1e-5, rtol=1e-5), "mismatch vs reference"

    print("KERNEL_OK")
</pallas_src>

<mosaic_0001>
module attributes {stable_mosaic.version = 11 : i64} {
  func.func @_linear_kernel(%arg0: i32, %arg1: memref<8x32xf32, #tpu.memory_space<vmem>>, %arg2: memref<32x32xf32, #tpu.memory_space<vmem>>, %arg3: memref<1x32xf32, #tpu.memory_space<vmem>>, %arg4: memref<8x32xf32, #tpu.memory_space<vmem>>) attributes {dimension_semantics = [#tpu.dimension_semantics<parallel>], iteration_bounds = array<i64: 1>, scalar_prefetch = 0 : i64, scratch_operands = 0 : i64, tpu.core_type = #tpu.core_type<tc>, window_params = [{pipeline_mode = #tpu.pipeline_mode<synchronous>, transform_indices = @transform_0, window_bounds = array<i64: 8, 32>}, {transform_indices = @transform_1, window_bounds = array<i64: 32, 32>}, {transform_indices = @transform_2, window_bounds = array<i64: 1, 32>}, {transform_indices = @transform_3, window_bounds = array<i64: 8, 32>}]} {
    %c0 = arith.constant 0 : index
    %c0_0 = arith.constant 0 : index
    %0 = vector.load %arg1[%c0, %c0_0] : memref<8x32xf32, #tpu.memory_space<vmem>>, vector<8x32xf32>
    %c0_1 = arith.constant 0 : index
    %c0_2 = arith.constant 0 : index
    %1 = vector.load %arg2[%c0_1, %c0_2] : memref<32x32xf32, #tpu.memory_space<vmem>>, vector<32x32xf32>
    %2 = vector.shape_cast %0 : vector<8x32xf32> to vector<8x1x32xf32>
    %3 = vector.shape_cast %1 : vector<32x32xf32> to vector<1x32x32xf32>
    %4 = vector.broadcast %2 : vector<8x1x32xf32> to vector<8x32x32xf32>
    %5 = vector.broadcast %3 : vector<1x32x32xf32> to vector<8x32x32xf32>
    %6 = arith.mulf %4, %5 : vector<8x32x32xf32>
    %cst = arith.constant dense<0.000000e+00> : vector<8x32xf32>
    %7 = vector.multi_reduction <add>, %6, %cst [2] : vector<8x32x32xf32> to vector<8x32xf32>
    %c0_3 = arith.constant 0 : index
    %c0_4 = arith.constant 0 : index
    %8 = vector.load %arg3[%c0_3, %c0_4] : memref<1x32xf32, #tpu.memory_space<vmem>>, vector<1x32xf32>
    %9 = vector.broadcast %8 : vector<1x32xf32> to vector<8x32xf32>
    %10 = arith.addf %7, %9 : vector<8x32xf32>
    %c0_5 = arith.constant 0 : index
    %c0_6 = arith.constant 0 : index
    %11 = vector.load %arg4[%c0_5, %c0_6] : memref<8x32xf32, #tpu.memory_space<vmem>>, vector<8x32xf32>
    tpu.vector_store %arg4[%c0_5, %c0_6], %10 {strides = array<i32>} : memref<8x32xf32, #tpu.memory_space<vmem>>, vector<8x32xf32>,
    return
  }
  func.func @transform_0(%arg0: i32) -> (i32, i32) {
    %c0_i32 = arith.constant 0 : i32
    %c0_i32_0 = arith.constant 0 : i32
    %c0_i32_1 = arith.constant 0 : i32
    return %c0_i32, %c0_i32_0 : i32, i32
  }
  func.func @transform_1(%arg0: i32) -> (i32, i32) {
    %c0_i32 = arith.constant 0 : i32
    %c0_i32_0 = arith.constant 0 : i32
    return %arg0, %c0_i32 : i32, i32
  }
  func.func @transform_2(%arg0: i32) -> (i32, i32) {
    %c0_i32 = arith.constant 0 : i32
    %c0_i32_0 = arith.constant 0 : i32
    return %c0_i32, %arg0 : i32, i32
  }
  func.func @transform_3(%arg0: i32) -> (i32, i32) {
    %c0_i32 = arith.constant 0 : i32
    %c0_i32_0 = arith.constant 0 : i32
    return %c0_i32, %arg0 : i32, i32
  }
}

</mosaic_0001>

<llo_original>
// kernel: tpu_custom_call.1
$region0: #{tpu_custom_call.1}
  #allocation0 [shape = 'u32[]', space=smem, size = 0x4, offset = 0x4, fixed_abs, tag = 'smem constant byte address 0x4 - core index']
  #allocation1 [shape = 'u32[72,128]{1,0:T(1,128)}', space=vmem, size = 0x9000, scoped, tag = 'internal scratch']
  %s0 = inlined_call_operand.hbm [shape: f32[8,32], index: 0, kind: input, shape index: {}]
  %s1 = inlined_call_operand.hbm [shape: f32[32,32], index: 1, kind: input, shape index: {}]
  %s2 = inlined_call_operand.vmem [shape: f32[1,32], index: 2, kind: input, shape index: {}]
  %s3 = inlined_call_operand.hbm [shape: f32[8,32], index: 3, kind: output, shape index: {}]
  %s4 = sld [smem:[#allocation0]]
  $region30: #{tpu_custom_call.1} parent=0
    _
  %s6 = ssub.s32 1, %s4
  %s7 = scalar_select 0, %s6, %s4
  $region1: #{tpu_custom_call.1} parent=0
    #allocation2 [shape = 'u8[4096]{0}', space=vmem, size = 0x1000, scoped, tag = 'input window, operand 0, single buffered']
    #allocation3 [shape = 's32[1]{0}', space=sflag, size = 0x4, scoped, tag = 'scoped memory for tpu_custom_call.1']
    #allocation4 [shape = 's32[1]{0}', space=sflag, size = 0x4, scoped, tag = 'scoped memory for tpu_custom_call.1']
    #allocation5 [shape = 'u8[16384]{0}', space=vmem, size = 0x4000, scoped, tag = 'input window, operand 1, single buffered']
    #allocation6 [shape = 's32[1]{0}', space=sflag, size = 0x4, scoped, tag = 'scoped memory for tpu_custom_call.1']
    #allocation7 [shape = 'u8[4096]{0}', space=vmem, size = 0x1000, scoped, tag = 'output window, operand 0, single buffered']
    %8 = vsyncpa [#allocation3], 0
    %9 = vsyncpa [#allocation6], 0
    %10 = vsyncpa [#allocation4], 0
    // Predicated region
    $region2: #{tpu_custom_call.1} parent=1 // pred_check
      _
    $region3: #{tpu_custom_call.1} parent=1 // pred_check_branch
      %12 = sbr.rel (0) target = $region5
    $region4: #{tpu_custom_call.1} parent=1 // pred_region
      %14 = vsyncadd [#allocation3], 0
      %s16 = sshll.u32 %s0, 4
      %s17 = int_to_ptr.hbm [resolvable:$true] %s16
      %s18 = sshll.u32 [#allocation2], 4
      %s19 = int_to_ptr.vmem [resolvable:$true] %s18
      %21 = dma.hbm_to_vmem [thread:$0]  %s17, 128, %s19, [#allocation3]
    $region5: #{tpu_custom_call.1} parent=1 // pred_fallthru
      _
    // Predicated region
    $region6: #{tpu_custom_call.1} parent=1 // pred_check
      _
    $region7: #{tpu_custom_call.1} parent=1 // pred_check_branch
      %23 = sbr.rel (0) target = $region9
    $region8: #{tpu_custom_call.1} parent=1 // pred_region
      %25 = vsyncadd [#allocation6], 0
      %s26 = sshll.u32 %s1, 4
      %s27 = int_to_ptr.hbm [resolvable:$true] %s26
      %s28 = sshll.u32 [#allocation5], 4
      %s29 = int_to_ptr.vmem [resolvable:$true] %s28
      %34 = dma.hbm_to_vmem [thread:$0]  %s27, 512, %s29, [#allocation6], 128, 128, 8
    $region9: #{tpu_custom_call.1} parent=1 // pred_fallthru
      _
    // Predicated region
    $region10: #{tpu_custom_call.1} parent=1 // pred_check
      _
    $region11: #{tpu_custom_call.1} parent=1 // pred_check_branch
      %36 = sbr.rel (0) target = $region13
    $region12: #{tpu_custom_call.1} parent=1 // pred_region
      _
    $region13: #{tpu_custom_call.1} parent=1 // pred_fallthru
      _
    // Predicated region
    $region14: #{tpu_custom_call.1} parent=1 // pred_check
      _
    $region15: #{tpu_custom_call.1} parent=1 // pred_check_branch
      %38 = sbr.rel (0) target = $region17
    $region16: #{tpu_custom_call.1} parent=1 // pred_region
      %40 = dma.done [#allocation3], 128
    $region17: #{tpu_custom_call.1} parent=1 // pred_fallthru
      _
    // Predicated region
    $region18: #{tpu_custom_call.1} parent=1 // pred_check
      _
    $region19: #{tpu_custom_call.1} parent=1 // pred_check_branch
      %42 = sbr.rel (0) target = $region21
    $region20: #{tpu_custom_call.1} parent=1 // pred_region
      %44 = dma.done [#allocation6], 512
    $region21: #{tpu_custom_call.1} parent=1 // pred_fallthru
      _
    %v45 = vld [vmem:[#allocation2] sm:$0xff]
    %v46 = vld [vmem:[#allocation5] sm:$0xff]
    %v47 = vld [vmem:[#allocation5 + $0x8] sm:$0xff]
    %v48 = vld [vmem:[#allocation5 + $0x10] sm:$0xff]
    %v49 = vld [vmem:[#allocation5 + $0x18] sm:$0xff]
    %v51 = vrot.slane %v45, 1
    %v52 = vrot.slane %v45, 2
    %v53 = vrot.slane %v45, 3
    %v54 = vrot.slane %v45, 4
    %v55 = vrot.slane %v45, 5
    %v56 = vrot.slane %v45, 6
    %v57 = vrot.slane %v45, 7
    %v58 = vperm.slane %v45, 0
    %v59 = vperm.slane %v51, 0
    %v60 = vperm.slane %v52, 0
    %v61 = vperm.slane %v53, 0
    %v62 = vperm.slane %v54, 0
    %v63 = vperm.slane %v55, 0
    %v64 = vperm.slane %v56, 0
    %v65 = vperm.slane %v57, 0
    %v74 = vmul.f32 %v58, %v46
    %v75 = vmul.f32 %v58, %v47
    %v76 = vmul.f32 %v58, %v48
    %v77 = vmul.f32 %v58, %v49
    %v78 = vmul.f32 %v59, %v46
    %v79 = vmul.f32 %v59, %v47
    %v80 = vmul.f32 %v59, %v48
    %v81 = vmul.f32 %v59, %v49
    %v82 = vmul.f32 %v60, %v46
    %v83 = vmul.f32 %v60, %v47
    %v84 = vmul.f32 %v60, %v48
    %v85 = vmul.f32 %v60, %v49
    %v86 = vmul.f32 %v61, %v46
    %v87 = vmul.f32 %v61, %v47
    %v88 = vmul.f32 %v61, %v48
    %v89 = vmul.f32 %v61, %v49
    %v90 = vmul.f32 %v62, %v46
    %v91 = vmul.f32 %v62, %v47
    %v92 = vmul.f32 %v62, %v48
    %v93 = vmul.f32 %v62, %v49
    %v94 = vmul.f32 %v63, %v46
    %v95 = vmul.f32 %v63, %v47
    %v96 = vmul.f32 %v63, %v48
    %v97 = vmul.f32 %v63, %v49
    %v98 = vmul.f32 %v64, %v46
    %v99 = vmul.f32 %v64, %v47
    %v100 = vmul.f32 %v64, %v48
    %v101 = vmul.f32 %v64, %v49
    %v102 = vmul.f32 %v65, %v46
    %v103 = vmul.f32 %v65, %v47
    %v104 = vmul.f32 %v65, %v48
    %v105 = vmul.f32 %v65, %v49
    %vm106 = vcmask 261120
    %v107 = vsel %vm106, %v74, 0.0
    %108 = vadd.xlane.f32.xlu0 %v107
    %v109 = vpop.xlane.xlu0 %108
    %v110 = vsel %vm106, %v75, 0.0
    %111 = vadd.xlane.f32.xlu0 %v110
    %v112 = vpop.xlane.xlu0 %111
    %v113 = vsel %vm106, %v76, 0.0
    %114 = vadd.xlane.f32.xlu0 %v113
    %v115 = vpop.xlane.xlu0 %114
    %v116 = vsel %vm106, %v77, 0.0
    %117 = vadd.xlane.f32.xlu0 %v116
    %v118 = vpop.xlane.xlu0 %117
    %v119 = vsel %vm106, %v78, 0.0
    %120 = vadd.xlane.f32.xlu0 %v119
    %v121 = vpop.xlane.xlu0 %120
    %v122 = vsel %vm106, %v79, 0.0
    %123 = vadd.xlane.f32.xlu0 %v122
    %v124 = vpop.xlane.xlu0 %123
    %v125 = vsel %vm106, %v80, 0.0
    %126 = vadd.xlane.f32.xlu0 %v125
    %v127 = vpop.xlane.xlu0 %126
    %v128 = vsel %vm106, %v81, 0.0
    %129 = vadd.xlane.f32.xlu0 %v128
    %v130 = vpop.xlane.xlu0 %129
    %v131 = vsel %vm106, %v82, 0.0
    %132 = vadd.xlane.f32.xlu0 %v131
    %v133 = vpop.xlane.xlu0 %132
    %v134 = vsel %vm106, %v83, 0.0
    %135 = vadd.xlane.f32.xlu0 %v134
    %v136 = vpop.xlane.xlu0 %135
    %v137 = vsel %vm106, %v84, 0.0
    %138 = vadd.xlane.f32.xlu0 %v137
    %v139 = vpop.xlane.xlu0 %138
    %v140 = vsel %vm106, %v85, 0.0
    %141 = vadd.xlane.f32.xlu0 %v140
    %v142 = vpop.xlane.xlu0 %141
    %v143 = vsel %vm106, %v86, 0.0
    %144 = vadd.xlane.f32.xlu0 %v143
    %v145 = vpop.xlane.xlu0 %144
    %v146 = vsel %vm106, %v87, 0.0
    %147 = vadd.xlane.f32.xlu0 %v146
    %v148 = vpop.xlane.xlu0 %147
    %v149 = vsel %vm106, %v88, 0.0
    %150 = vadd.xlane.f32.xlu0 %v149
    %v151 = vpop.xlane.xlu0 %150
    %v152 = vsel %vm106, %v89, 0.0
    %153 = vadd.xlane.f32.xlu0 %v152
    %v154 = vpop.xlane.xlu0 %153
    %v155 = vsel %vm106, %v90, 0.0
    %156 = vadd.xlane.f32.xlu0 %v155
    %v157 = vpop.xlane.xlu0 %156
    %v158 = vsel %vm106, %v91, 0.0
    %159 = vadd.xlane.f32.xlu0 %v158
    %v160 = vpop.xlane.xlu0 %159
    %v161 = vsel %vm106, %v92, 0.0
    %162 = vadd.xlane.f32.xlu0 %v161
    %v163 = vpop.xlane.xlu0 %162
    %v164 = vsel %vm106, %v93, 0.0
    %165 = vadd.xlane.f32.xlu0 %v164
    %v166 = vpop.xlane.xlu0 %165
    %v167 = vsel %vm106, %v94, 0.0
    %168 = vadd.xlane.f32.xlu0 %v167
    %v169 = vpop.xlane.xlu0 %168
    %v170 = vsel %vm106, %v95, 0.0
    %171 = vadd.xlane.f32.xlu0 %v170
    %v172 = vpop.xlane.xlu0 %171
    %v173 = vsel %vm106, %v96, 0.0
    %174 = vadd.xlane.f32.xlu0 %v173
    %v175 = vpop.xlane.xlu0 %174
    %v176 = vsel %vm106, %v97, 0.0
    %177 = vadd.xlane.f32.xlu0 %v176
    %v178 = vpop.xlane.xlu0 %177
    %v179 = vsel %vm106, %v98, 0.0
    %180 = vadd.xlane.f32.xlu0 %v179
    %v181 = vpop.xlane.xlu0 %180
    %v182 = vsel %vm106, %v99, 0.0
    %183 = vadd.xlane.f32.xlu0 %v182
    %v184 = vpop.xlane.xlu0 %183
    %v185 = vsel %vm106, %v100, 0.0
    %186 = vadd.xlane.f32.xlu0 %v185
    %v187 = vpop.xlane.xlu0 %186
    %v188 = vsel %vm106, %v101, 0.0
    %189 = vadd.xlane.f32.xlu0 %v188
    %v190 = vpop.xlane.xlu0 %189
    %v191 = vsel %vm106, %v102, 0.0
    %192 = vadd.xlane.f32.xlu0 %v191
    %v193 = vpop.xlane.xlu0 %192
    %v194 = vsel %vm106, %v103, 0.0
    %195 = vadd.xlane.f32.xlu0 %v194
    %v196 = vpop.xlane.xlu0 %195
    %v197 = vsel %vm106, %v104, 0.0
    %198 = vadd.xlane.f32.xlu0 %v197
    %v199 = vpop.xlane.xlu0 %198
    %v200 = vsel %vm106, %v105, 0.0
    %201 = vadd.xlane.f32.xlu0 %v200
    %v202 = vpop.xlane.xlu0 %201
    %v203 = vld [vmem:[%s2] sm:$0x1]
    %v205 = vperm.slane %v203, 0
    %v206 = vlaneseq
    %v207 = vshrl.u32 %v206, 7
    %209 = vset.pattern.permute.xlu0 %v207
    %210 = vperm.xlu0 %209, %v205
    %v211 = vpop.permute.xlu0 %210
    %v212 = vlaneseq
    %v213 = vshrl.u32 %v212, 7
    %v214 = vadd.s32 %v213, 8
    %215 = vset.pattern.permute.xlu0 %v214
    %216 = vperm.xlu0 %215, %v205
    %v217 = vpop.permute.xlu0 %216
    %v218 = vlaneseq
    %v219 = vshrl.u32 %v218, 7
    %v220 = vadd.s32 %v219, 16
    %221 = vset.pattern.permute.xlu0 %v220
    %222 = vperm.xlu0 %221, %v205
    %v223 = vpop.permute.xlu0 %222
    %v224 = vlaneseq
    %v225 = vshrl.u32 %v224, 7
    %v226 = vadd.s32 %v225, 24
    %227 = vset.pattern.permute.xlu0 %v226
    %228 = vperm.xlu0 %227, %v205
    %v229 = vpop.permute.xlu0 %228
    %v234 = vadd.f32 %v109, %v211
    %v235 = vadd.f32 %v112, %v217
    %v236 = vadd.f32 %v115, %v223
    %v237 = vadd.f32 %v118, %v229
    %v238 = vadd.f32 %v121, %v211
    %v239 = vadd.f32 %v124, %v217
    %v240 = vadd.f32 %v127, %v223
    %v241 = vadd.f32 %v130, %v229
    %v242 = vadd.f32 %v133, %v211
    %v243 = vadd.f32 %v136, %v217
    %v244 = vadd.f32 %v139, %v223
    %v245 = vadd.f32 %v142, %v229
    %v246 = vadd.f32 %v145, %v211
    %v247 = vadd.f32 %v148, %v217
    %v248 = vadd.f32 %v151, %v223
    %v249 = vadd.f32 %v154, %v229
    %v250 = vadd.f32 %v157, %v211
    %v251 = vadd.f32 %v160, %v217
    %v252 = vadd.f32 %v163, %v223
    %v253 = vadd.f32 %v166, %v229
    %v254 = vadd.f32 %v169, %v211
    %v255 = vadd.f32 %v172, %v217
    %v256 = vadd.f32 %v175, %v223
    %v257 = vadd.f32 %v178, %v229
    %v258 = vadd.f32 %v181, %v211
    %v259 = vadd.f32 %v184, %v217
    %v260 = vadd.f32 %v187, %v223
    %v261 = vadd.f32 %v190, %v229
    %v262 = vadd.f32 %v193, %v211
    %v263 = vadd.f32 %v196, %v217
    %v264 = vadd.f32 %v199, %v223
    %v265 = vadd.f32 %v202, %v229
    %298 = vset.pattern.permute.xlu0 0
    %299 = vperm.xlu0 %298, %v234
    %v300 = vpop.permute.xlu0 %299
    %301 = vset.pattern.permute.xlu0 0
    %302 = vperm.xlu0 %301, %v235
    %v303 = vpop.permute.xlu0 %302
    %304 = vset.pattern.permute.xlu0 0
    %305 = vperm.xlu0 %304, %v236
    %v306 = vpop.permute.xlu0 %305
    %307 = vset.pattern.permute.xlu0 0
    %308 = vperm.xlu0 %307, %v237
    %v309 = vpop.permute.xlu0 %308
    %310 = vset.pattern.permute.xlu0 0
    %311 = vperm.xlu0 %310, %v238
    %v312 = vpop.permute.xlu0 %311
    %313 = vset.pattern.permute.xlu0 0
    %314 = vperm.xlu0 %313, %v239
    %v315 = vpop.permute.xlu0 %314
    %316 = vset.pattern.permute.xlu0 0
    %317 = vperm.xlu0 %316, %v240
    %v318 = vpop.permute.xlu0 %317
    %319 = vset.pattern.permute.xlu0 0
    %320 = vperm.xlu0 %319, %v241
    %v321 = vpop.permute.xlu0 %320
    %322 = vset.pattern.permute.xlu0 0
    %323 = vperm.xlu0 %322, %v242
    %v324 = vpop.permute.xlu0 %323
    %325 = vset.pattern.permute.xlu0 0
    %326 = vperm.xlu0 %325, %v243
    %v327 = vpop.permute.xlu0 %326
    %328 = vset.pattern.permute.xlu0 0
    %329 = vperm.xlu0 %328, %v244
    %v330 = vpop.permute.xlu0 %329
    %331 = vset.pattern.permute.xlu0 0
    %332 = vperm.xlu0 %331, %v245
    %v333 = vpop.permute.xlu0 %332
    %334 = vset.pattern.permute.xlu0 0
    %335 = vperm.xlu0 %334, %v246
    %v336 = vpop.permute.xlu0 %335
    %337 = vset.pattern.permute.xlu0 0
    %338 = vperm.xlu0 %337, %v247
    %v339 = vpop.permute.xlu0 %338
    %340 = vset.pattern.permute.xlu0 0
    %341 = vperm.xlu0 %340, %v248
    %v342 = vpop.permute.xlu0 %341
    %343 = vset.pattern.permute.xlu0 0
    %344 = vperm.xlu0 %343, %v249
    %v345 = vpop.permute.xlu0 %344
    %346 = vset.pattern.permute.xlu0 0
    %347 = vperm.xlu0 %346, %v250
    %v348 = vpop.permute.xlu0 %347
    %349 = vset.pattern.permute.xlu0 0
    %350 = vperm.xlu0 %349, %v251
    %v351 = vpop.permute.xlu0 %350
    %352 = vset.pattern.permute.xlu0 0
    %353 = vperm.xlu0 %352, %v252
    %v354 = vpop.permute.xlu0 %353
    %355 = vset.pattern.permute.xlu0 0
    %356 = vperm.xlu0 %355, %v253
    %v357 = vpop.permute.xlu0 %356
    %358 = vset.pattern.permute.xlu0 0
    %359 = vperm.xlu0 %358, %v254
    %v360 = vpop.permute.xlu0 %359
    %361 = vset.pattern.permute.xlu0 0
    %362 = vperm.xlu0 %361, %v255
    %v363 = vpop.permute.xlu0 %362
    %364 = vset.pattern.permute.xlu0 0
    %365 = vperm.xlu0 %364, %v256
    %v366 = vpop.permute.xlu0 %365
    %367 = vset.pattern.permute.xlu0 0
    %368 = vperm.xlu0 %367, %v257
    %v369 = vpop.permute.xlu0 %368
    %370 = vset.pattern.permute.xlu0 0
    %371 = vperm.xlu0 %370, %v258
    %v372 = vpop.permute.xlu0 %371
    %373 = vset.pattern.permute.xlu0 0
    %374 = vperm.xlu0 %373, %v259
    %v375 = vpop.permute.xlu0 %374
    %376 = vset.pattern.permute.xlu0 0
    %377 = vperm.xlu0 %376, %v260
    %v378 = vpop.permute.xlu0 %377
    %379 = vset.pattern.permute.xlu0 0
    %380 = vperm.xlu0 %379, %v261
    %v381 = vpop.permute.xlu0 %380
    %382 = vset.pattern.permute.xlu0 0
    %383 = vperm.xlu0 %382, %v262
    %v384 = vpop.permute.xlu0 %383
    %385 = vset.pattern.permute.xlu0 0
    %386 = vperm.xlu0 %385, %v263
    %v387 = vpop.permute.xlu0 %386
    %388 = vset.pattern.permute.xlu0 0
    %389 = vperm.xlu0 %388, %v264
    %v390 = vpop.permute.xlu0 %389
    %391 = vset.pattern.permute.xlu0 0
    %392 = vperm.xlu0 %391, %v265
    %v393 = vpop.permute.xlu0 %392
    %v394 = vlaneseq
    %v395 = vand.u32 %v394, 127
    %v396 = vperm.slane %v300, %v395
    %v397 = vadd.s32 %v395, 4294967288
    %v398 = vperm.slane %v303, %v397
    %vm399 = vcmask 130112
    %v400 = vsel %vm399, %v398, %v396
    %v401 = vadd.s32 %v395, 4294967280
    %v402 = vperm.slane %v306, %v401
    %vm403 = vcmask 195712
    %v404 = vsel %vm403, %v402, %v400
    %v405 = vadd.s32 %v395, 4294967272
    %v406 = vperm.slane %v309, %v405
    %vm407 = vcmask 261312
    %v408 = vsel %vm407, %v406, %v404
    %v409 = vperm.slane %v312, %v395
    %v410 = vperm.slane %v315, %v397
    %v411 = vsel %vm399, %v410, %v409
    %v412 = vperm.slane %v318, %v401
    %v413 = vsel %vm403, %v412, %v411
    %v414 = vperm.slane %v321, %v405
    %v415 = vsel %vm407, %v414, %v413
    %v416 = vperm.slane %v324, %v395
    %v417 = vperm.slane %v327, %v397
    %v418 = vsel %vm399, %v417, %v416
    %v419 = vperm.slane %v330, %v401
    %v420 = vsel %vm403, %v419, %v418
    %v421 = vperm.slane %v333, %v405
    %v422 = vsel %vm407, %v421, %v420
    %v423 = vperm.slane %v336, %v395
    %v424 = vperm.slane %v339, %v397
    %v425 = vsel %vm399, %v424, %v423
    %v426 = vperm.slane %v342, %v401
    %v427 = vsel %vm403, %v426, %v425
    %v428 = vperm.slane %v345, %v405
    %v429 = vsel %vm407, %v428, %v427
    %v430 = vperm.slane %v348, %v395
    %v431 = vperm.slane %v351, %v397
    %v432 = vsel %vm399, %v431, %v430
    %v433 = vperm.slane %v354, %v401
    %v434 = vsel %vm403, %v433, %v432
    %v435 = vperm.slane %v357, %v405
    %v436 = vsel %vm407, %v435, %v434
    %v437 = vperm.slane %v360, %v395
    %v438 = vperm.slane %v363, %v397
    %v439 = vsel %vm399, %v438, %v437
    %v440 = vperm.slane %v366, %v401
    %v441 = vsel %vm403, %v440, %v439
    %v442 = vperm.slane %v369, %v405
    %v443 = vsel %vm407, %v442, %v441
    %v444 = vperm.slane %v372, %v395
    %v445 = vperm.slane %v375, %v397
    %v446 = vsel %vm399, %v445, %v444
    %v447 = vperm.slane %v378, %v401
    %v448 = vsel %vm403, %v447, %v446
    %v449 = vperm.slane %v381, %v405
    %v450 = vsel %vm407, %v449, %v448
    %v451 = vperm.slane %v384, %v395
    %v452 = vperm.slane %v387, %v397
    %v453 = vsel %vm399, %v452, %v451
    %v454 = vperm.slane %v390, %v401
    %v455 = vsel %vm403, %v454, %v453
    %v456 = vperm.slane %v393, %v405
    %v457 = vsel %vm407, %v456, %v455
    %vm458 = vcmask 1041409
    %v459 = vsel %vm458, %v415, %v408
    %vm460 = vcmask 1042434
    %v461 = vsel %vm460, %v422, %v459
    %vm462 = vcmask 1043459
    %v463 = vsel %vm462, %v429, %v461
    %vm464 = vcmask 1044484
    %v465 = vsel %vm464, %v436, %v463
    %vm466 = vcmask 1045509
    %v467 = vsel %vm466, %v443, %v465
    %vm468 = vcmask 1046534
    %v469 = vsel %vm468, %v450, %v467
    %vm470 = vcmask 1047559
    %v471 = vsel %vm470, %v457, %v469
    %473 = vst.msk [vmem:[#allocation7] sm:$0xff] %vm106, %v471
    // Predicated region
    $region22: #{tpu_custom_call.1} parent=1 // pred_check
      _
    $region23: #{tpu_custom_call.1} parent=1 // pred_check_branch
      %475 = sbr.rel (0) target = $region25
    $region24: #{tpu_custom_call.1} parent=1 // pred_region
      %477 = vsyncadd [#allocation4], 0
      %s479 = sshll.u32 [#allocation7], 4
      %s480 = int_to_ptr.vmem [resolvable:$true] %s479
      %s481 = sshll.u32 %s3, 4
      %s482 = int_to_ptr.hbm [resolvable:$true] %s481
      %484 = dma.vmem_to_hbm [thread:$0]  %s480, 128, %s482, [#allocation4]
    $region25: #{tpu_custom_call.1} parent=1 // pred_fallthru
      _
    // Predicated region
    $region26: #{tpu_custom_call.1} parent=1 // pred_check
      _
    $region27: #{tpu_custom_call.1} parent=1 // pred_check_branch
      %486 = sbr.rel (0) target = $region29
    $region28: #{tpu_custom_call.1} parent=1 // pred_region
      %488 = dma.done [#allocation4], 128
    $region29: #{tpu_custom_call.1} parent=1 // pred_fallthru
      _
    %489 = vsyncpa [#allocation3], 1
    %490 = vsyncpa [#allocation6], 1
    %491 = vsyncpa [#allocation4], 1

</llo_original>
